<compile_context>
chip_gen: v7x
topology: tpu7x:2x2x1
jax: 0.10.0
libtpu: 0.0.40
codegen_flags: <defaults>
</compile_context>

<pallas_src>
import functools

import jax
import jax.numpy as jnp
import numpy as np
from jax.experimental import pallas as pl
from jax.experimental.pallas import tpu as pltpu

COMPUTE_DTYPE = jnp.bfloat16  # native MXU dtype on v5e/v6e/v7x


# ----------------------------------------------------------------------------
# Helpers
# ----------------------------------------------------------------------------
def _pick_tile(dim, pref, align):
    """Largest multiple of `align` <= `pref` that divides `dim`; else full dim."""
    # TODO(synk): clamp the full-dim fallback (with masked remainder blocks)
    # for huge non-power-of-two dims so v7x's 64 MiB VMEM is never exceeded.
    t = pref
    while t >= align:
        if dim % t == 0:
            return t
        t //= 2
    return dim


def _mosaic_params(semantics, vmem_bytes_needed):
    """CompilerParams with an explicit, tile-derived VMEM limit."""
    limit = int(min(max(2 * vmem_bytes_needed, 32 * 1024 * 1024),
                    100 * 1024 * 1024))
    return pltpu.CompilerParams(dimension_semantics=semantics,
                                vmem_limit_bytes=limit)


# ----------------------------------------------------------------------------
# Tiled linear (x @ w_t) kernel
# ----------------------------------------------------------------------------
def _linear_kernel(x_ref, w_ref, o_ref, acc_ref):
    @pl.when(pl.program_id(2) == 0)
    def _():
        acc_ref[...] = jnp.zeros_like(acc_ref)

    acc_ref[...] += jnp.dot(
        x_ref[...], w_ref[...], preferred_element_type=jnp.float32
    )

    @pl.when(pl.program_id(2) == pl.num_programs(2) - 1)
    def _():
        o_ref[...] = acc_ref[...].astype(o_ref.dtype)


def pallas_linear(x, w_t, *, tm_pref=256, tn_pref=512, tk_pref=1024):
    """x: (M, K), w_t: (K, N) -> (M, N).  Equivalent to F.linear(x, w), w=(N,K)."""
    M, K = x.shape
    K2, N = w_t.shape
    assert K == K2
    m_align = 16 if x.dtype == jnp.bfloat16 else 8   # bf16 sublane packing
    tm = _pick_tile(M, tm_pref, m_align)
    tn = _pick_tile(N, tn_pref, 128)                 # lane-dense output tiles
    tk = _pick_tile(K, tk_pref, 128)
    grid = (M // tm, N // tn, K // tk)
    dsz = jnp.dtype(x.dtype).itemsize
    vmem = 2 * (tm * tk + tk * tn) * dsz + 2 * tm * tn * dsz + tm * tn * 4
    return pl.pallas_call(
        _linear_kernel,
        out_shape=jax.ShapeDtypeStruct((M, N), x.dtype),
        grid=grid,
        in_specs=[
            pl.BlockSpec((tm, tk), lambda i, j, k: (i, k)),
            pl.BlockSpec((tk, tn), lambda i, j, k: (k, j)),
        ],
        out_specs=pl.BlockSpec((tm, tn), lambda i, j, k: (i, j)),
        scratch_shapes=[pltpu.VMEM((tm, tn), jnp.float32)],
        compiler_params=_mosaic_params(("parallel", "parallel", "arbitrary"),
                                       vmem),
    )(x, w_t)


# ----------------------------------------------------------------------------
# In-place (aliased) KV-cache scatter: new rows -> (B, KVH, S, D) caches
# ----------------------------------------------------------------------------
def _kv_update_kernel(idx_ref, xk_ref, xv_ref, kc_in_ref, vc_in_ref,
                      kc_out_ref, vc_out_ref, sem_k, sem_v):
    del kc_in_ref, vc_in_ref       # present only to carry the i/o aliasing
    T = xk_ref.shape[2]

    def body(t, carry):
        pos = idx_ref[t]
        ck = pltpu.make_async_copy(
            xk_ref.at[:, :, pl.ds(t, 1), :],
            kc_out_ref.at[:, :, pl.ds(pos, 1), :], sem_k)
        cv = pltpu.make_async_copy(
            xv_ref.at[:, :, pl.ds(t, 1), :],
            vc_out_ref.at[:, :, pl.ds(pos, 1), :], sem_v)
        ck.start()
        cv.start()
        ck.wait()
        cv.wait()
        return carry

    jax.lax.fori_loop(0, T, body, 0)


def pallas_kv_cache_update(kv_write_indices, xk_t, xv_t, k_cache, v_cache):
    """Scatter xk_t/xv_t (B, KVH, T, D) into the caches at kv_write_indices.

    The caches are aliased input->output, so only the new rows are moved
    (no full-cache read/write).
    """
    grid_spec = pltpu.PrefetchScalarGridSpec(
        num_scalar_prefetch=1,
        grid=(1,),
        in_specs=[pl.BlockSpec(memory_space=pl.ANY)] * 4,
        out_specs=[pl.BlockSpec(memory_space=pl.ANY)] * 2,
        scratch_shapes=[pltpu.SemaphoreType.DMA, pltpu.SemaphoreType.DMA],
    )
    return pl.pallas_call(
        _kv_update_kernel,
        grid_spec=grid_spec,
        out_shape=(jax.ShapeDtypeStruct(k_cache.shape, k_cache.dtype),
                   jax.ShapeDtypeStruct(v_cache.shape, v_cache.dtype)),
        # operand order: 0=indices, 1=xk_t, 2=xv_t, 3=k_cache, 4=v_cache
        input_output_aliases={3: 0, 4: 1},
        compiler_params=pltpu.CompilerParams(
            dimension_semantics=("arbitrary",)),
    )(kv_write_indices, xk_t, xv_t, k_cache, v_cache)


# ----------------------------------------------------------------------------
# Flash-style attention kernel (GQA inside the kernel, online softmax over S)
# ----------------------------------------------------------------------------
def _attn_kernel(q_ref, k_ref, v_ref, mask_ref, o_ref, m_sc, l_sc, acc_sc, *,
                 scaling, num_q_per_kv):
    s_idx = pl.program_id(2)

    @pl.when(s_idx == 0)
    def _():
        m_sc[...] = jnp.full_like(m_sc, -1e30)   # finite: robust to -inf masks
        l_sc[...] = jnp.zeros_like(l_sc)
        acc_sc[...] = jnp.zeros_like(acc_sc)

    # scale q (M*D elems) instead of the (M, tS) scores tile
    q = q_ref[0, 0] * scaling                    # (G*T, D), rows ordered (g, t)
    k = k_ref[0, 0]                              # (tS, D)
    v = v_ref[0, 0]                              # (tS, D)
    mask = mask_ref[0].astype(jnp.float32)       # (T, tS), additive

    # One MXU matmul for all query heads of this kv group (no tiny per-head dots).
    scores = jax.lax.dot_general(
        q, k, (((1,), (1,)), ((), ())),
        preferred_element_type=jnp.float32)      # (G*T, tS)

    G = num_q_per_kv
    T, tS = mask.shape
    # TODO(synk): generate the causal mask in-kernel from broadcasted_iota +
    # scalar-prefetched positions instead of streaming an HBM f32 mask block.
    scores = scores + jnp.broadcast_to(mask[None], (G, T, tS)).reshape(G * T, tS)

    # online softmax (f32)
    m_prev = m_sc[...]
    m_new = jnp.maximum(m_prev, jnp.max(scores, axis=-1, keepdims=True))
    alpha = jnp.exp(m_prev - m_new)
    p = jnp.exp(scores - m_new)
    l_sc[...] = alpha * l_sc[...] + jnp.sum(p, axis=-1, keepdims=True)
    acc_sc[...] = alpha * acc_sc[...] + jax.lax.dot_general(
        p.astype(v.dtype), v, (((1,), (0,)), ((), ())),
        preferred_element_type=jnp.float32)
    m_sc[...] = m_new

    @pl.when(s_idx == pl.num_programs(2) - 1)
    def _():
        l = l_sc[...]
        inv = pl.reciprocal(l, approx=True)
        inv = inv * (2.0 - l * inv)              # Newton step -> ~f32 accuracy
        o_ref[0, 0] = (acc_sc[...] * inv).astype(o_ref.dtype)


def pallas_attention(q, k, v, mask, scaling, num_q_per_kv, *, ts_pref=1024):
    """q: (B, KVH, G*T, D) rows ordered (g, t); k/v: (B, KVH, S, D) head-major
    caches (read directly, no transpose); mask: (B, T, S) additive."""
    B, KVH, M, D = q.shape
    S = k.shape[2]
    T = M // num_q_per_kv
    tS = _pick_tile(S, ts_pref, 128)             # sweep: ~512 on v7x, 1024 on v6e
    ns = S // tS
    kernel = functools.partial(
        _attn_kernel, scaling=scaling, num_q_per_kv=num_q_per_kv)
    dsz = jnp.dtype(q.dtype).itemsize
    vmem = (2 * M * D * dsz                       # q block + out block
            + 2 * 2 * tS * D * dsz                # double-buffered K and V tiles
            + 2 * T * tS * jnp.dtype(mask.dtype).itemsize
            + M * (D + 2) * 4)                    # f32 online-softmax scratch
    # TODO(synk): tile the query (G*T) axis for long prefill (bounds VMEM on
    # v7x's 64 MiB and adds core-parallel grid work for its 2 TensorCores).
    return pl.pallas_call(
        kernel,
        out_shape=jax.ShapeDtypeStruct((B, KVH, M, D), q.dtype),
        grid=(B, KVH, ns),
        in_specs=[
            pl.BlockSpec((1, 1, M, D), lambda b, h, s: (b, h, 0, 0)),
            pl.BlockSpec((1, 1, tS, D), lambda b, h, s: (b, h, s, 0)),
            pl.BlockSpec((1, 1, tS, D), lambda b, h, s: (b, h, s, 0)),
            pl.BlockSpec((1, T, tS), lambda b, h, s: (b, 0, s)),
        ],
        out_specs=pl.BlockSpec((1, 1, M, D), lambda b, h, s: (b, h, 0, 0)),
        scratch_shapes=[
            pltpu.VMEM((M, 1), jnp.float32),     # running max
            pltpu.VMEM((M, 1), jnp.float32),     # running denominator
            pltpu.VMEM((M, D), jnp.float32),     # running weighted values
        ],
        compiler_params=_mosaic_params(("parallel", "parallel", "arbitrary"),
                                       vmem),
    )(q, k, v, mask)


# ----------------------------------------------------------------------------
# Glue (rotary embedding) in plain JAX
# ----------------------------------------------------------------------------
def apply_rotary_emb(x, cos, sin):
    """x: (B, T, H, D); cos/sin: (T, D//2).  Half-split rotary (matches torch ref)."""
    D = x.shape[-1]
    x1 = x[..., : D // 2]
    x2 = x[..., D // 2:]
    c = cos[None, :, None, :]
    s = sin[None, :, None, :]
    out1 = x1 * c - x2 * s
    out2 = x1 * s + x2 * c
    return jnp.concatenate([out1, out2], axis=-1).astype(x.dtype)


# ----------------------------------------------------------------------------
class GemmaAttentionPallas:
    def __init__(self, hidden_size, num_heads, num_kv_heads, head_dim, key):
        assert num_heads % num_kv_heads == 0
        self.num_heads = num_heads
        self.num_kv_heads = num_kv_heads
        self.num_queries_per_kv = num_heads // num_kv_heads
        self.hidden_size = hidden_size
        self.head_dim = head_dim
        self.q_size = num_heads * head_dim
        self.kv_size = num_kv_heads * head_dim
        self.scaling = head_dim ** (-0.5)

        k1, k2 = jax.random.split(key)
        qkv_out = (num_heads + 2 * num_kv_heads) * head_dim
        # Weights stored pre-transposed (in, out) and in bf16 (native MXU dtype).
        self.qkv_weight_t = (
            jax.random.normal(k1, (hidden_size, qkv_out), jnp.float32) * 0.05
        ).astype(COMPUTE_DTYPE)
        self.o_weight_t = (
            jax.random.normal(k2, (self.q_size, hidden_size), jnp.float32) * 0.05
        ).astype(COMPUTE_DTYPE)

    def __call__(self, hidden_states, freqs_cos, freqs_sin, kv_write_indices,
                 kv_cache, mask):
        """kv_cache is stored head-major: (B, KVH, S, D), bf16."""
        B, T, _ = hidden_states.shape
        H, KVH = self.num_heads, self.num_kv_heads
        G, D = self.num_queries_per_kv, self.head_dim

        # qkv projection (tiled Pallas matmul, bf16 inputs, f32 accumulation)
        x2d = hidden_states.reshape(B * T, self.hidden_size).astype(COMPUTE_DTYPE)
        qkv = pallas_linear(x2d, self.qkv_weight_t)
        xq = qkv[:, : self.q_size].reshape(B, T, H, D)
        xk = qkv[:, self.q_size: self.q_size + self.kv_size].reshape(B, T, KVH, D)
        xv = qkv[:, self.q_size + self.kv_size:].reshape(B, T, KVH, D)

        # rotary embedding (glue)
        xq = apply_rotary_emb(xq, freqs_cos, freqs_sin)
        xk = apply_rotary_emb(xk, freqs_cos, freqs_sin)

        # KV-cache update: only the new tokens are transposed (cheap) and DMA'd
        # into the head-major cache via the aliased scatter kernel.
        k_cache, v_cache = kv_cache
        xk_t = jnp.transpose(xk, (0, 2, 1, 3)).astype(k_cache.dtype)  # (B,KVH,T,D)
        xv_t = jnp.transpose(xv, (0, 2, 1, 3)).astype(v_cache.dtype)
        k_cache, v_cache = pallas_kv_cache_update(
            kv_write_indices, xk_t, xv_t, k_cache, v_cache)

        # GQA handled inside the attention kernel: q heads of one kv group are
        # collapsed into the matmul M dimension, rows ordered (g, t).
        # TODO(synk): fold this transpose (and the inverse below) into the
        # attention BlockSpec index_map to avoid the extra activation pass.
        q = (xq.reshape(B, T, KVH, G, D)
               .transpose(0, 2, 3, 1, 4)              # (B, KVH, G, T, D)
               .reshape(B, KVH, G * T, D))
        mask_bts = mask[:, 0, :, :]                   # (B, T, S)

        attn = pallas_attention(q, k_cache, v_cache, mask_bts, self.scaling, G)

        # back to (B*T, H*D): q-head index = kvh * G + g (matches reference order)
        out2d = (attn.reshape(B, KVH, G, T, D)
                     .transpose(0, 3, 1, 2, 4)        # (B, T, KVH, G, D)
                     .reshape(B * T, self.q_size))

        out = pallas_linear(out2d, self.o_weight_t).reshape(B, T, self.hidden_size)
        return out.astype(hidden_states.dtype), (k_cache, v_cache)

    # pure-jnp f32 reference (same layouts) for correctness checking
    def reference(self, hidden_states, freqs_cos, freqs_sin, kv_write_indices,
                  kv_cache, mask):
        B, T, _ = hidden_states.shape
        w_qkv = self.qkv_weight_t.astype(jnp.float32)
        w_o = self.o_weight_t.astype(jnp.float32)
        x = hidden_states.astype(COMPUTE_DTYPE).astype(jnp.float32)
        qkv = x.reshape(B * T, -1) @ w_qkv
        qkv = qkv.reshape(B, T, -1)
        xq = qkv[..., : self.q_size].reshape(B, T, self.num_heads, self.head_dim)
        xk = qkv[..., self.q_size: self.q_size + self.kv_size].reshape(
            B, T, self.num_kv_heads, self.head_dim)
        xv = qkv[..., self.q_size + self.kv_size:].reshape(
            B, T, self.num_kv_heads, self.head_dim)
        xq = apply_rotary_emb(xq, freqs_cos, freqs_sin)
        xk = apply_rotary_emb(xk, freqs_cos, freqs_sin)
        k_cache, v_cache = kv_cache                    # (B, KVH, S, D)
        k_cache = k_cache.at[:, :, kv_write_indices, :].set(
            jnp.transpose(xk, (0, 2, 1, 3)).astype(k_cache.dtype))
        v_cache = v_cache.at[:, :, kv_write_indices, :].set(
            jnp.transpose(xv, (0, 2, 1, 3)).astype(v_cache.dtype))
        key = k_cache.astype(jnp.float32)
        value = v_cache.astype(jnp.float32)
        if self.num_kv_heads != self.num_heads:
            key = jnp.repeat(key, self.num_queries_per_kv, axis=1)
            value = jnp.repeat(value, self.num_queries_per_kv, axis=1)
        qh = jnp.transpose(xq, (0, 2, 1, 3))           # (B, H, T, D)
        scores = jnp.einsum("bhtd,bhsd->bhts", qh, key) * self.scaling + mask
        probs = jax.nn.softmax(scores.astype(jnp.float32), axis=-1)
        out = jnp.einsum("bhts,bhsd->bhtd", probs, value)
        out = jnp.transpose(out, (0, 2, 1, 3)).reshape(B, T, self.q_size)
        return out @ w_o, (k_cache, v_cache)


# ----------------------------------------------------------------------------
if __name__ == "__main__":
    B, T, S = 2, 8, 16                     # batch, input_len, cache length
    hidden_size, num_heads, num_kv_heads, head_dim = 32, 4, 2, 16

    root = jax.random.PRNGKey(0)
    k_w, k_x = jax.random.split(root)

    attn = GemmaAttentionPallas(hidden_size, num_heads, num_kv_heads, head_dim, k_w)

    hidden_states = jax.random.normal(k_x, (B, T, hidden_size), jnp.float32)

    # rotary frequencies for positions kv_write_indices (theta = 10000)
    kv_write_indices = jnp.arange(T, dtype=jnp.int32)
    inv_freq = 1.0 / (10000.0 ** (jnp.arange(0, head_dim, 2, dtype=jnp.float32)
                                  / head_dim))
    angles = kv_write_indices.astype(jnp.float32)[:, None] * inv_freq[None, :]
    freqs_cos = jnp.cos(angles)            # (T, D/2)
    freqs_sin = jnp.sin(angles)            # (T, D/2)

    # KV cache stored head-major (B, KVH, S, D), bf16.
    k_cache = jnp.zeros((B, num_kv_heads, S, head_dim), COMPUTE_DTYPE)
    v_cache = jnp.zeros((B, num_kv_heads, S, head_dim), COMPUTE_DTYPE)

    # causal mask over cache positions: query at position p may attend to j <= p
    col = jnp.arange(S)[None, :]
    row = kv_write_indices[:, None]
    mask = jnp.where(col <= row, 0.0, -1e9).astype(jnp.float32)
    mask = jnp.broadcast_to(mask[None, None, :, :], (B, 1, T, S))

    out, (kc, vc) = attn(hidden_states, freqs_cos, freqs_sin, kv_write_indices,
                         (k_cache, v_cache), mask)
    out = jax.block_until_ready(out)

    ref_out, (ref_kc, ref_vc) = attn.reference(
        hidden_states, freqs_cos, freqs_sin, kv_write_indices,
        (k_cache, v_cache), mask)

    np.testing.assert_allclose(np.asarray(out, dtype=np.float32),
                               np.asarray(ref_out, dtype=np.float32),
                               rtol=2e-2, atol=2e-2)
    np.testing.assert_allclose(np.asarray(kc, dtype=np.float32),
                               np.asarray(ref_kc, dtype=np.float32),
                               rtol=2e-2, atol=2e-2)
    np.testing.assert_allclose(np.asarray(vc, dtype=np.float32),
                               np.asarray(ref_vc, dtype=np.float32),
                               rtol=2e-2, atol=2e-2)

    print("KERNEL_OK")
</pallas_src>

<mosaic_0001>
module attributes {stable_mosaic.version = 11 : i64} {
  func.func @_linear_kernel(%arg0: i32, %arg1: i32, %arg2: i32, %arg3: memref<16x32xbf16, #tpu.memory_space<vmem>>, %arg4: memref<32x128xbf16, #tpu.memory_space<vmem>>, %arg5: memref<16x128xbf16, #tpu.memory_space<vmem>>, %arg6: memref<16x128xf32, #tpu.memory_space<vmem>>) attributes {dimension_semantics = [#tpu.dimension_semantics<parallel>, #tpu.dimension_semantics<parallel>, #tpu.dimension_semantics<arbitrary>], iteration_bounds = array<i64: 1, 1, 1>, scalar_prefetch = 0 : i64, scratch_operands = 1 : i64, tpu.core_type = #tpu.core_type<tc>, window_params = [{transform_indices = @transform_0, window_bounds = array<i64: 16, 32>}, {transform_indices = @transform_1, window_bounds = array<i64: 32, 128>}, {transform_indices = @transform_2, window_bounds = array<i64: 16, 128>}]} {
    %c0_i32 = arith.constant 0 : i32
    %0 = arith.cmpi eq, %arg2, %c0_i32 : i32
    %1 = arith.extui %0 : i1 to i32
    %c0_i32_0 = arith.constant 0 : i32
    %2 = arith.cmpi ne, %1, %c0_i32_0 : i32
    scf.if %2 {
      %cst_10 = arith.constant 0.000000e+00 : f32
      %12 = vector.broadcast %cst_10 : f32 to vector<16x128xf32>
      %c0_11 = arith.constant 0 : index
      %c0_12 = arith.constant 0 : index
      %13 = vector.load %arg6[%c0_11, %c0_12] : memref<16x128xf32, #tpu.memory_space<vmem>>, vector<16x128xf32>
      tpu.vector_store %arg6[%c0_11, %c0_12], %12 {strides = array<i32>} : memref<16x128xf32, #tpu.memory_space<vmem>>, vector<16x128xf32>,
    } else {
    }
    %c0 = arith.constant 0 : index
    %c0_1 = arith.constant 0 : index
    %3 = vector.load %arg6[%c0, %c0_1] : memref<16x128xf32, #tpu.memory_space<vmem>>, vector<16x128xf32>
    %c0_2 = arith.constant 0 : index
    %c0_3 = arith.constant 0 : index
    %4 = vector.load %arg3[%c0_2, %c0_3] : memref<16x32xbf16, #tpu.memory_space<vmem>>, vector<16x32xbf16>
    %c0_4 = arith.constant 0 : index
    %c0_5 = arith.constant 0 : index
    %5 = vector.load %arg4[%c0_4, %c0_5] : memref<32x128xbf16, #tpu.memory_space<vmem>>, vector<32x128xbf16>
    %cst = arith.constant dense<0.000000e+00> : vector<16x128xf32>
    %6 = tpu.matmul %4, %5, %cst {dimension_numbers = #tpu.dot_dimension_numbers<[1], [0], [0], [1], [0, 0, 1, 1], [], []>} : vector<16x32xbf16>, vector<32x128xbf16>, vector<16x128xf32> -> vector<16x128xf32>
    %7 = arith.addf %3, %6 : vector<16x128xf32>
    %c0_6 = arith.constant 0 : index
    %c0_7 = arith.constant 0 : index
    %8 = vector.load %arg6[%c0_6, %c0_7] : memref<16x128xf32, #tpu.memory_space<vmem>>, vector<16x128xf32>
    tpu.vector_store %arg6[%c0_6, %c0_7], %7 {strides = array<i32>} : memref<16x128xf32, #tpu.memory_space<vmem>>, vector<16x128xf32>,
    %c0_i32_8 = arith.constant 0 : i32
    %9 = arith.cmpi eq, %arg2, %c0_i32_8 : i32
    %10 = arith.extui %9 : i1 to i32
    %c0_i32_9 = arith.constant 0 : i32
    %11 = arith.cmpi ne, %10, %c0_i32_9 : i32
    scf.if %11 {
      %c0_10 = arith.constant 0 : index
      %c0_11 = arith.constant 0 : index
      %12 = vector.load %arg6[%c0_10, %c0_11] : memref<16x128xf32, #tpu.memory_space<vmem>>, vector<16x128xf32>
      %13 = arith.truncf %12 : vector<16x128xf32> to vector<16x128xbf16>
      %c0_12 = arith.constant 0 : index
      %c0_13 = arith.constant 0 : index
      %14 = vector.load %arg5[%c0_12, %c0_13] : memref<16x128xbf16, #tpu.memory_space<vmem>>, vector<16x128xbf16>
      tpu.vector_store %arg5[%c0_12, %c0_13], %13 {strides = array<i32>} : memref<16x128xbf16, #tpu.memory_space<vmem>>, vector<16x128xbf16>,
    } else {
    }
    return
  }
  func.func @transform_0(%arg0: i32, %arg1: i32, %arg2: i32) -> (i32, i32) {
    %c0_i32 = arith.constant 0 : i32
    return %arg0, %arg2 : i32, i32
  }
  func.func @transform_1(%arg0: i32, %arg1: i32, %arg2: i32) -> (i32, i32) {
    %c0_i32 = arith.constant 0 : i32
    return %arg2, %arg1 : i32, i32
  }
  func.func @transform_2(%arg0: i32, %arg1: i32, %arg2: i32) -> (i32, i32) {
    %c0_i32 = arith.constant 0 : i32
    return %arg0, %arg1 : i32, i32
  }
}

</mosaic_0001>

<llo_original>
// kernel: tpu_custom_call.1
$region0: #{tpu_custom_call.1}
  #allocation0 [shape = 'u32[]', space=smem, size = 0x4, offset = 0x4, fixed_abs, tag = 'smem constant byte address 0x4 - core index']
  #allocation1 [shape = 'u32[144,128]{1,0:T(1,128)}', space=vmem, size = 0x12000, scoped, tag = 'internal scratch']
  #allocation2 [shape = 'f32[16,128]{1,0:T(8,128)}', space=vmem, size = 0x2000, scoped, tag = 'scratch operand']
  %s0 = inlined_call_operand.hbm [shape: bf16[16,32], index: 0, kind: input, shape index: {}]
  %s1 = inlined_call_operand.hbm [shape: bf16[32,128], index: 1, kind: input, shape index: {}]
  %s2 = inlined_call_operand.hbm [shape: bf16[16,128], index: 2, kind: output, shape index: {}]
  %s3 = sld [smem:[#allocation0]]
  $region34: #{tpu_custom_call.1} parent=0
    _
  %s5 = ssub.s32 1, %s3
  %s6 = scalar_select 0, %s5, %s3
  $region1: #{tpu_custom_call.1} parent=0
    #allocation3 [shape = 'u8[4096]{0}', space=vmem, size = 0x1000, scoped, tag = 'input window, operand 0, single buffered']
    #allocation4 [shape = 's32[1]{0}', space=sflag, size = 0x4, scoped, tag = 'scoped memory for tpu_custom_call.1']
    #allocation5 [shape = 's32[1]{0}', space=sflag, size = 0x4, scoped, tag = 'scoped memory for tpu_custom_call.1']
    #allocation6 [shape = 'u8[8192]{0}', space=vmem, size = 0x2000, scoped, tag = 'input window, operand 1, single buffered']
    #allocation7 [shape = 's32[1]{0}', space=sflag, size = 0x4, scoped, tag = 'scoped memory for tpu_custom_call.1']
    #allocation8 [shape = 'u8[4096]{0}', space=vmem, size = 0x1000, scoped, tag = 'output window, operand 0, single buffered']
    %7 = vsyncpa [#allocation4], 0
    %8 = vsyncpa [#allocation7], 0
    %9 = vsyncpa [#allocation5], 0
    // Predicated region
    $region2: #{tpu_custom_call.1} parent=1 // pred_check
      _
    $region3: #{tpu_custom_call.1} parent=1 // pred_check_branch
      %11 = sbr.rel (0) target = $region5
    $region4: #{tpu_custom_call.1} parent=1 // pred_region
      %s13 = ssub.s32 128, 128
      %14 = vsyncadd [#allocation4], %s13
      %s15 = sshll.u32 [#allocation3], 4
      %s16 = int_to_ptr.vmem [resolvable:$true] %s15
      %21 = dma.hbm_to_vmem [thread:$0]  %s0, 128, %s16, [#allocation4], 64, 64, 4
    $region5: #{tpu_custom_call.1} parent=1 // pred_fallthru
      _
    // Predicated region
    $region6: #{tpu_custom_call.1} parent=1 // pred_check
      _
    $region7: #{tpu_custom_call.1} parent=1 // pred_check_branch
      %23 = sbr.rel (0) target = $region9
    $region8: #{tpu_custom_call.1} parent=1 // pred_region
      %s25 = ssub.s32 256, 256
      %26 = vsyncadd [#allocation7], %s25
      %s27 = sshll.u32 [#allocation6], 4
      %s28 = int_to_ptr.vmem [resolvable:$true] %s27
      %33 = dma.hbm_to_vmem [thread:$0]  %s1, 256, %s28, [#allocation7], 64, 64, 4
    $region9: #{tpu_custom_call.1} parent=1 // pred_fallthru
      _
    // Predicated region
    $region10: #{tpu_custom_call.1} parent=1 // pred_check
      _
    $region11: #{tpu_custom_call.1} parent=1 // pred_check_branch
      %35 = sbr.rel (0) target = $region13
    $region12: #{tpu_custom_call.1} parent=1 // pred_region
      %36 = dma.done [#allocation4], 128
    $region13: #{tpu_custom_call.1} parent=1 // pred_fallthru
      _
    // Predicated region
    $region14: #{tpu_custom_call.1} parent=1 // pred_check
      _
    $region15: #{tpu_custom_call.1} parent=1 // pred_check_branch
      %38 = sbr.rel (0) target = $region17
    $region16: #{tpu_custom_call.1} parent=1 // pred_region
      %39 = dma.done [#allocation7], 256
    $region17: #{tpu_custom_call.1} parent=1 // pred_fallthru
      _
    %p41 = scmp.eq.s32.totalorder 0, 0
    // Predicated region
    $region18: #{tpu_custom_call.1} parent=1 // pred_check
      %p42 = pneg %p41
    $region19: #{tpu_custom_call.1} parent=1 // pred_check_branch
      %44 = sbr.rel (%p42) target = $region21
    $region20: #{tpu_custom_call.1} parent=1 // pred_region
      %45 = vst [vmem:[#allocation2] sm:$0xff] 0.0
      %46 = vst [vmem:[#allocation2 + $0x8] sm:$0xff] 0.0
    $region21: #{tpu_custom_call.1} parent=1 // pred_fallthru
      _
    %v47 = vld [vmem:[#allocation2] sm:$0xff]
    %v48 = vld [vmem:[#allocation2 + $0x8] sm:$0xff]
    %v49 = vld [vmem:[#allocation3] sm:$0xf]
    %v50 = vld [vmem:[#allocation3 + $0x4] sm:$0xf]
    %v51 = vld [vmem:[#allocation6] sm:$0xf]
    %v52 = vld [vmem:[#allocation6 + $0x4] sm:$0xf]
    %v53 = vld [vmem:[#allocation6 + $0x8] sm:$0xf]
    %v54 = vld [vmem:[#allocation6 + $0xc] sm:$0xf]
    %v57 = vunpack.c.l.b16 %v49
    %v58 = vunpack.c.l.b16 %v50
    %v59 = vpack.c.b16 %v58, %v57
    %v64 = vunpack.c.l.b16 %v51
    %v65 = vunpack.c.l.b16 %v52
    %v66 = vunpack.c.l.b16 %v53
    %v67 = vunpack.c.l.b16 %v54
    %v68 = vpack.c.b16 %v65, %v64
    %v69 = vpack.c.b16 %v67, %v66
    %vm72 = vcmask 261120
    %v74 = vsel %vm72, %v59, 0
    %76 = vmatprep.subr.bf16.mxu0 0
    %77 = vmatpush1.bf16.msra.mxu0 %v68
    %78 = vmatprep.subr.bf16.mxu0 0
    %79 = vmatpush1.bf16.msra.mxu0 %v69
    %80 = vmatprep.subr.bf16.mxu0 0
    %81 = vmatpush1.bf16.msra.mxu0 0
    %82 = vmatprep.subr.bf16.mxu0 0
    %83 = vmatpush1.bf16.msra.mxu0 0
    %84 = vmatprep.subr.bf16.mxu0 0
    %85 = vmatpush1.bf16.msra.mxu0 0
    %86 = vmatprep.subr.bf16.mxu0 0
    %87 = vmatpush1.bf16.msra.mxu0 0
    %88 = vmatprep.subr.bf16.mxu0 0
    %89 = vmatpush1.bf16.msra.mxu0 0
    %90 = vmatprep.subr.bf16.mxu0 0
    %91 = vmatpush1.bf16.msra.mxu0 0
    %92 = vmatprep.subr.bf16.mxu0 0
    %93 = vmatpush1.bf16.msra.mxu0 0
    %94 = vmatprep.subr.bf16.mxu0 0
    %95 = vmatpush1.bf16.msra.mxu0 0
    %96 = vmatprep.subr.bf16.mxu0 0
    %97 = vmatpush1.bf16.msra.mxu0 0
    %98 = vmatprep.subr.bf16.mxu0 0
    %99 = vmatpush1.bf16.msra.mxu0 0
    %100 = vmatprep.subr.bf16.mxu0 0
    %101 = vmatpush1.bf16.msra.mxu0 0
    %102 = vmatprep.subr.bf16.mxu0 0
    %103 = vmatpush1.bf16.msra.mxu0 0
    %104 = vmatprep.subr.bf16.mxu0 0
    %105 = vmatpush1.bf16.msra.mxu0 0
    %106 = vmatprep.subr.bf16.mxu0 0
    %107 = vmatpush1.bf16.msra.mxu0 0
    %108 = vmatprep.mubr.bf16.mxu0 0
    %109 = vmatmul.mubr.bf16.gmra.mrb[0].mxu0 %v74
    %v110 = vpop.f32.mrb[0].mxu0
    %v111 = vadd.f32 0.0, %v110
    %v112 = vpop.f32.mrb[0].mxu0
    %v113 = vpop.f32.mrb[0].mxu0
    %v114 = vadd.f32 0.0, %v113
    %v115 = vpop.f32.mrb[0].mxu0
    %116 = vdwg.mxu0
    %v117 = vadd.f32 %v47, %v111
    %v118 = vadd.f32 %v48, %v114
    %119 = vst [vmem:[#allocation2] sm:$0xff] %v117
    %120 = vst [vmem:[#allocation2 + $0x8] sm:$0xff] %v118
    // Predicated region
    $region22: #{tpu_custom_call.1} parent=1 // pred_check
      %p121 = pneg %p41
    $region23: #{tpu_custom_call.1} parent=1 // pred_check_branch
      %123 = sbr.rel (%p121) target = $region25
    $region24: #{tpu_custom_call.1} parent=1 // pred_region
      %v124 = vld [vmem:[#allocation2] sm:$0xff]
      %v125 = vld [vmem:[#allocation2 + $0x8] sm:$0xff]
      %v126 = vpack.c.bf16 %v125, %v124
      %v128 = vunpack.c.l.b16 %v126
      %v129 = vunpack.c.h.b16 %v126
      %v130 = vpack.c.b16 %v128, %v128
      %v131 = vpack.c.b16 %v129, %v129
      %134 = vst [vmem:[#allocation8] sm:$0xf] %v130
      %135 = vst [vmem:[#allocation8 + $0x4] sm:$0xf] %v131
    $region25: #{tpu_custom_call.1} parent=1 // pred_fallthru
      _
    // Predicated region
    $region26: #{tpu_custom_call.1} parent=1 // pred_check
      _
    $region27: #{tpu_custom_call.1} parent=1 // pred_check_branch
      %137 = sbr.rel (0) target = $region29
    $region28: #{tpu_custom_call.1} parent=1 // pred_region
      %s139 = ssub.s32 128, 128
      %140 = vsyncadd [#allocation5], %s139
      %s141 = sshll.u32 [#allocation8], 4
      %s142 = int_to_ptr.vmem [resolvable:$true] %s141
      %147 = dma.vmem_to_hbm [thread:$0]  %s142, 128, %s2, [#allocation5], 64, 64, 4
    $region29: #{tpu_custom_call.1} parent=1 // pred_fallthru
      _
    // Predicated region
    $region30: #{tpu_custom_call.1} parent=1 // pred_check
      _
    $region31: #{tpu_custom_call.1} parent=1 // pred_check_branch
      %149 = sbr.rel (0) target = $region33
    $region32: #{tpu_custom_call.1} parent=1 // pred_region
      %150 = dma.done [#allocation5], 128
    $region33: #{tpu_custom_call.1} parent=1 // pred_fallthru
      _
    %151 = vsyncpa [#allocation4], 1
    %152 = vsyncpa [#allocation7], 1
    %153 = vsyncpa [#allocation5], 1

</llo_original>
